<compile_context>
chip_gen: v5e
topology: v5e:2x2
jax: 0.10.0
libtpu: 0.0.40
codegen_flags: <defaults>
</compile_context>

<pallas_src>
import functools
import math

import jax
import jax.numpy as jnp
from jax.experimental import pallas as pl
from jax.experimental.pallas import tpu as pltpu


def _gelu_erf(x):
    # Original BERT gelu: x * 0.5 * (1 + erf(x / sqrt(2)))
    return x * 0.5 * (1.0 + jax.lax.erf(x / math.sqrt(2.0)))


def _round_up(x, m):
    return ((x + m - 1) // m) * m


def _transform_kernel(x_ref, w_ref, b_ref, g_ref, beta_ref, o_ref, *, eps):
    # x_ref: (tm, H) bf16, w_ref: (H, H) bf16, b/g/beta: (1, H) f32, o_ref: (tm, H) bf16
    y = jnp.dot(x_ref[...], w_ref[...], preferred_element_type=jnp.float32)
    y = y + b_ref[...]                      # bias add in f32
    y = _gelu_erf(y)                        # erf-gelu in f32 (EUP)
    mean = jnp.mean(y, axis=-1, keepdims=True)
    ctr = y - mean
    var = jnp.mean(ctr * ctr, axis=-1, keepdims=True)
    yn = ctr * jax.lax.rsqrt(var + eps)
    o_ref[...] = (yn * g_ref[...] + beta_ref[...]).astype(o_ref.dtype)


def _decoder_kernel(t_ref, w_ref, b_ref, o_ref):
    # t_ref: (tm, H) bf16, w_ref: (H, tn) bf16, b_ref: (1, tn) f32, o_ref: (tm, tn) out dtype
    acc = jnp.dot(t_ref[...], w_ref[...], preferred_element_type=jnp.float32)
    o_ref[...] = (acc + b_ref[...]).astype(o_ref.dtype)


def bert_lm_prediction_head(
    hidden_states,            # (B, S, H)
    transform_weight_t,       # (H, H)  -- pre-transposed (contract: y = x @ W_t)
    transform_bias,           # (H,)
    ln_gamma,                 # (H,)
    ln_beta,                  # (H,)
    decoder_weight_t,         # (H, V)  -- pre-transposed
    decoder_bias,             # (V,)
    *,
    layer_norm_eps=1e-12,
    compute_dtype=jnp.bfloat16,
    tm=256,
    tn=1024,
):
    B, S, H = hidden_states.shape
    V = decoder_weight_t.shape[1]
    M = B * S
    out_dtype = hidden_states.dtype

    # Tile sizes: multiples of (8, 128); shrink for tiny problems, pad one partial tile otherwise.
    tm = min(tm, _round_up(M, 8))
    tn = min(tn, _round_up(V, 128))
    Mp = _round_up(M, tm)
    Vp = _round_up(V, tn)

    x2d = hidden_states.reshape(M, H).astype(compute_dtype)
    if Mp != M:
        x2d = jnp.pad(x2d, ((0, Mp - M), (0, 0)))

    w1 = transform_weight_t.astype(compute_dtype)            # (H, H)
    b1 = transform_bias.reshape(1, H).astype(jnp.float32)
    g = ln_gamma.reshape(1, H).astype(jnp.float32)
    be = ln_beta.reshape(1, H).astype(jnp.float32)

    # ---- Stage 1: dense + gelu + LayerNorm (fused), row-tiled ----
    t2d = pl.pallas_call(
        functools.partial(_transform_kernel, eps=layer_norm_eps),
        out_shape=jax.ShapeDtypeStruct((Mp, H), compute_dtype),
        grid_spec=pltpu.PrefetchScalarGridSpec(
            num_scalar_prefetch=0,
            grid=(Mp // tm,),
            in_specs=[
                pl.BlockSpec((tm, H), lambda i: (i, 0)),   # x row-tile
                pl.BlockSpec((H, H), lambda i: (0, 0)),    # transform weight (resident)
                pl.BlockSpec((1, H), lambda i: (0, 0)),    # transform bias
                pl.BlockSpec((1, H), lambda i: (0, 0)),    # LayerNorm gamma
                pl.BlockSpec((1, H), lambda i: (0, 0)),    # LayerNorm beta
            ],
            out_specs=pl.BlockSpec((tm, H), lambda i: (i, 0)),
        ),
        compiler_params=pltpu.CompilerParams(
            dimension_semantics=("parallel",)),
    )(x2d, w1, b1, g, be)

    # ---- Stage 2: decoder matmul + vocab bias, row x vocab tiled ----
    w2 = decoder_weight_t.astype(compute_dtype)               # (H, V)
    b2 = decoder_bias.reshape(1, V).astype(jnp.float32)
    if Vp != V:
        w2 = jnp.pad(w2, ((0, 0), (0, Vp - V)))
        b2 = jnp.pad(b2, ((0, 0), (0, Vp - V)))

    out2d = pl.pallas_call(
        _decoder_kernel,
        out_shape=jax.ShapeDtypeStruct((Mp, Vp), out_dtype),
        grid_spec=pltpu.PrefetchScalarGridSpec(
            num_scalar_prefetch=0,
            grid=(Mp // tm, Vp // tn),
            in_specs=[
                pl.BlockSpec((tm, H), lambda i, j: (i, 0)),   # transformed row-tile
                pl.BlockSpec((H, tn), lambda i, j: (0, j)),   # decoder weight tile
                pl.BlockSpec((1, tn), lambda i, j: (0, j)),   # vocab bias tile
            ],
            out_specs=pl.BlockSpec((tm, tn), lambda i, j: (i, j)),
        ),
        compiler_params=pltpu.CompilerParams(
            dimension_semantics=("parallel", "parallel")),
    )(t2d, w2, b2)

    return out2d[:M, :V].reshape(B, S, V)


def _reference(x, w1, b1, g, be, w2, b2, eps):
    # Pure-JAX f32 reference matching the PyTorch module exactly (PyTorch weight layout).
    y = jnp.einsum("bsh,oh->bso", x, w1) + b1
    y = _gelu_erf(y)
    mean = y.mean(axis=-1, keepdims=True)
    var = ((y - mean) ** 2).mean(axis=-1, keepdims=True)
    y = (y - mean) * jax.lax.rsqrt(var + eps) * g + be
    return jnp.einsum("bsh,vh->bsv", y, w2) + b2


if __name__ == "__main__":
    # Small config: hidden_size=32, vocab_size=128, batch=2, seq=8.
    B, S, H, V = 2, 8, 32, 128
    eps = 1e-12

    key = jax.random.PRNGKey(0)
    kx, kw1, kb1, kg, kbe, kw2, kb2 = jax.random.split(key, 7)

    hidden_states = jax.random.normal(kx, (B, S, H), dtype=jnp.float32)
    # Parameters in PyTorch layout (synthetic deterministic init, not a checkpoint load).
    w1 = jax.random.normal(kw1, (H, H), dtype=jnp.float32) * 0.02      # transform.dense.weight (out, in)
    b1 = jax.random.normal(kb1, (H,), dtype=jnp.float32) * 0.02        # transform.dense.bias
    gamma = 1.0 + jax.random.normal(kg, (H,), dtype=jnp.float32) * 0.05  # LayerNorm.weight
    beta = jax.random.normal(kbe, (H,), dtype=jnp.float32) * 0.05        # LayerNorm.bias
    w2 = jax.random.normal(kw2, (V, H), dtype=jnp.float32) * 0.02      # decoder.weight (vocab, hidden)
    b2 = jax.random.normal(kb2, (V,), dtype=jnp.float32) * 0.02        # head bias (vocab,)

    # Pre-transpose once outside the hot path (kernel contract takes (H,H)/(H,V)).
    w1_t = w1.T
    w2_t = w2.T

    out = bert_lm_prediction_head(
        hidden_states, w1_t, b1, gamma, beta, w2_t, b2, layer_norm_eps=eps)
    out = jax.block_until_ready(out)

    ref = _reference(hidden_states, w1, b1, gamma, beta, w2, b2, eps)
    assert out.shape == (B, S, V)
    # bf16 MXU inputs with f32 accumulation -> loosened tolerance vs f32 reference.
    assert jnp.allclose(out, ref, atol=1e-2, rtol=1e-2), "mismatch vs reference"

    print("KERNEL_OK")
</pallas_src>

<mosaic_0001>
module attributes {stable_mosaic.version = 11 : i64} {
  func.func @_transform_kernel(%arg0: i32, %arg1: memref<16x32xbf16, #tpu.memory_space<vmem>>, %arg2: memref<32x32xbf16, #tpu.memory_space<vmem>>, %arg3: memref<1x32xf32, #tpu.memory_space<vmem>>, %arg4: memref<1x32xf32, #tpu.memory_space<vmem>>, %arg5: memref<1x32xf32, #tpu.memory_space<vmem>>, %arg6: memref<16x32xbf16, #tpu.memory_space<vmem>>) attributes {dimension_semantics = [#tpu.dimension_semantics<parallel>], iteration_bounds = array<i64: 1>, scalar_prefetch = 0 : i64, scratch_operands = 0 : i64, tpu.core_type = #tpu.core_type<tc>, window_params = [{transform_indices = @transform_0, window_bounds = array<i64: 16, 32>}, {pipeline_mode = #tpu.pipeline_mode<synchronous>, transform_indices = @transform_1, window_bounds = array<i64: 32, 32>}, {pipeline_mode = #tpu.pipeline_mode<synchronous>, transform_indices = @transform_2, window_bounds = array<i64: 1, 32>}, {pipeline_mode = #tpu.pipeline_mode<synchronous>, transform_indices = @transform_3, window_bounds = array<i64: 1, 32>}, {pipeline_mode = #tpu.pipeline_mode<synchronous>, transform_indices = @transform_4, window_bounds = array<i64: 1, 32>}, {transform_indices = @transform_5, window_bounds = array<i64: 16, 32>}]} {
    %c0 = arith.constant 0 : index
    %c0_0 = arith.constant 0 : index
    %0 = vector.load %arg1[%c0, %c0_0] : memref<16x32xbf16, #tpu.memory_space<vmem>>, vector<16x32xbf16>
    %c0_1 = arith.constant 0 : index
    %c0_2 = arith.constant 0 : index
    %1 = vector.load %arg2[%c0_1, %c0_2] : memref<32x32xbf16, #tpu.memory_space<vmem>>, vector<32x32xbf16>
    %cst = arith.constant dense<0.000000e+00> : vector<16x32xf32>
    %2 = tpu.matmul %0, %1, %cst {dimension_numbers = #tpu.dot_dimension_numbers<[1], [0], [0], [1], [0, 0, 1, 1], [], []>} : vector<16x32xbf16>, vector<32x32xbf16>, vector<16x32xf32> -> vector<16x32xf32>
    %c0_3 = arith.constant 0 : index
    %c0_4 = arith.constant 0 : index
    %3 = vector.load %arg3[%c0_3, %c0_4] : memref<1x32xf32, #tpu.memory_space<vmem>>, vector<1x32xf32>
    %4 = vector.broadcast %3 : vector<1x32xf32> to vector<16x32xf32>
    %5 = arith.addf %2, %4 : vector<16x32xf32>
    %cst_5 = arith.constant 5.000000e-01 : f32
    %6 = vector.broadcast %cst_5 : f32 to vector<16x32xf32>
    %7 = arith.mulf %5, %6 : vector<16x32xf32>
    %cst_6 = arith.constant 1.41421354 : f32
    %8 = vector.broadcast %cst_6 : f32 to vector<16x32xf32>
    %9 = arith.divf %5, %8 : vector<16x32xf32>
    %10 = math.erf %9 : vector<16x32xf32>
    %cst_7 = arith.constant 1.000000e+00 : f32
    %11 = vector.broadcast %cst_7 : f32 to vector<16x32xf32>
    %12 = arith.addf %11, %10 : vector<16x32xf32>
    %13 = arith.mulf %7, %12 : vector<16x32xf32>
    %cst_8 = arith.constant dense<0.000000e+00> : vector<16xf32>
    %14 = vector.multi_reduction <add>, %13, %cst_8 [1] : vector<16x32xf32> to vector<16xf32>
    %15 = vector.shape_cast %14 : vector<16xf32> to vector<16x1xf32>
    %cst_9 = arith.constant 3.200000e+01 : f32
    %16 = vector.broadcast %cst_9 : f32 to vector<16x1xf32>
    %17 = arith.divf %15, %16 : vector<16x1xf32>
    %18 = vector.broadcast %17 : vector<16x1xf32> to vector<16x32xf32>
    %19 = arith.subf %13, %18 : vector<16x32xf32>
    %20 = arith.mulf %19, %19 : vector<16x32xf32>
    %cst_10 = arith.constant dense<0.000000e+00> : vector<16xf32>
    %21 = vector.multi_reduction <add>, %20, %cst_10 [1] : vector<16x32xf32> to vector<16xf32>
    %22 = vector.shape_cast %21 : vector<16xf32> to vector<16x1xf32>
    %cst_11 = arith.constant 3.200000e+01 : f32
    %23 = vector.broadcast %cst_11 : f32 to vector<16x1xf32>
    %24 = arith.divf %22, %23 : vector<16x1xf32>
    %cst_12 = arith.constant 9.99999996E-13 : f32
    %25 = vector.broadcast %cst_12 : f32 to vector<16x1xf32>
    %26 = arith.addf %24, %25 : vector<16x1xf32>
    %27 = math.rsqrt %26 : vector<16x1xf32>
    %28 = vector.broadcast %27 : vector<16x1xf32> to vector<16x32xf32>
    %29 = arith.mulf %19, %28 : vector<16x32xf32>
    %c0_13 = arith.constant 0 : index
    %c0_14 = arith.constant 0 : index
    %30 = vector.load %arg4[%c0_13, %c0_14] : memref<1x32xf32, #tpu.memory_space<vmem>>, vector<1x32xf32>
    %31 = vector.broadcast %30 : vector<1x32xf32> to vector<16x32xf32>
    %32 = arith.mulf %29, %31 : vector<16x32xf32>
    %c0_15 = arith.constant 0 : index
    %c0_16 = arith.constant 0 : index
    %33 = vector.load %arg5[%c0_15, %c0_16] : memref<1x32xf32, #tpu.memory_space<vmem>>, vector<1x32xf32>
    %34 = vector.broadcast %33 : vector<1x32xf32> to vector<16x32xf32>
    %35 = arith.addf %32, %34 : vector<16x32xf32>
    %36 = arith.truncf %35 : vector<16x32xf32> to vector<16x32xbf16>
    %c0_17 = arith.constant 0 : index
    %c0_18 = arith.constant 0 : index
    %37 = vector.load %arg6[%c0_17, %c0_18] : memref<16x32xbf16, #tpu.memory_space<vmem>>, vector<16x32xbf16>
    tpu.vector_store %arg6[%c0_17, %c0_18], %36 {strides = array<i32>} : memref<16x32xbf16, #tpu.memory_space<vmem>>, vector<16x32xbf16>,
    return
  }
  func.func @transform_0(%arg0: i32) -> (i32, i32) {
    %c0_i32 = arith.constant 0 : i32
    %c0_i32_0 = arith.constant 0 : i32
    return %arg0, %c0_i32 : i32, i32
  }
  func.func @transform_1(%arg0: i32) -> (i32, i32) {
    %c0_i32 = arith.constant 0 : i32
    %c0_i32_0 = arith.constant 0 : i32
    %c0_i32_1 = arith.constant 0 : i32
    return %c0_i32, %c0_i32_0 : i32, i32
  }
  func.func @transform_2(%arg0: i32) -> (i32, i32) {
    %c0_i32 = arith.constant 0 : i32
    %c0_i32_0 = arith.constant 0 : i32
    %c0_i32_1 = arith.constant 0 : i32
    return %c0_i32, %c0_i32_0 : i32, i32
  }
  func.func @transform_3(%arg0: i32) -> (i32, i32) {
    %c0_i32 = arith.constant 0 : i32
    %c0_i32_0 = arith.constant 0 : i32
    %c0_i32_1 = arith.constant 0 : i32
    return %c0_i32, %c0_i32_0 : i32, i32
  }
  func.func @transform_4(%arg0: i32) -> (i32, i32) {
    %c0_i32 = arith.constant 0 : i32
    %c0_i32_0 = arith.constant 0 : i32
    %c0_i32_1 = arith.constant 0 : i32
    return %c0_i32, %c0_i32_0 : i32, i32
  }
  func.func @transform_5(%arg0: i32) -> (i32, i32) {
    %c0_i32 = arith.constant 0 : i32
    %c0_i32_0 = arith.constant 0 : i32
    return %arg0, %c0_i32 : i32, i32
  }
}

</mosaic_0001>

<llo_original>
// kernel: tpu_custom_call.1
$region0: #{tpu_custom_call.1}
  #allocation0 [shape = 'u32[]', space=smem, size = 0x4, offset = 0x4, fixed_abs, tag = 'smem constant byte address 0x4 - core index']
  #allocation1 [shape = 'u32[72,128]{1,0:T(1,128)}', space=vmem, size = 0x9000, scoped, tag = 'internal scratch']
  %s0 = inlined_call_operand.hbm [shape: bf16[16,32], index: 0, kind: input, shape index: {}]
  %s1 = inlined_call_operand.hbm [shape: bf16[32,32], index: 1, kind: input, shape index: {}]
  %s2 = inlined_call_operand.vmem [shape: f32[1,32], index: 2, kind: input, shape index: {}]
  %s3 = inlined_call_operand.vmem [shape: f32[1,32], index: 3, kind: input, shape index: {}]
  %s4 = inlined_call_operand.vmem [shape: f32[1,32], index: 4, kind: input, shape index: {}]
  %s5 = inlined_call_operand.hbm [shape: bf16[16,32], index: 5, kind: output, shape index: {}]
  %s6 = sld [smem:[#allocation0]]
  $region38: #{tpu_custom_call.1} parent=0
    _
  %s8 = ssub.s32 1, %s6
  %s9 = scalar_select 0, %s8, %s6
  $region1: #{tpu_custom_call.1} parent=0
    #allocation2 [shape = 'u8[4096]{0}', space=vmem, size = 0x1000, scoped, tag = 'input window, operand 0, single buffered']
    #allocation3 [shape = 's32[1]{0}', space=sflag, size = 0x4, scoped, tag = 'scoped memory for tpu_custom_call.1']
    #allocation4 [shape = 's32[1]{0}', space=sflag, size = 0x4, scoped, tag = 'scoped memory for tpu_custom_call.1']
    #allocation5 [shape = 'u8[8192]{0}', space=vmem, size = 0x2000, scoped, tag = 'input window, operand 1, single buffered']
    #allocation6 [shape = 's32[1]{0}', space=sflag, size = 0x4, scoped, tag = 'scoped memory for tpu_custom_call.1']
    #allocation7 [shape = 'u8[4096]{0}', space=vmem, size = 0x1000, scoped, tag = 'output window, operand 0, single buffered']
    %10 = vsyncpa [#allocation3], 0
    %11 = vsyncpa [#allocation6], 0
    %12 = vsyncpa [#allocation4], 0
    // Predicated region
    $region2: #{tpu_custom_call.1} parent=1 // pred_check
      _
    $region3: #{tpu_custom_call.1} parent=1 // pred_check_branch
      %14 = sbr.rel (0) target = $region5
    $region4: #{tpu_custom_call.1} parent=1 // pred_region
      %16 = vsyncadd [#allocation3], 0
      %s17 = sshll.u32 %s0, 4
      %s18 = int_to_ptr.hbm [resolvable:$true] %s17
      %s19 = sshll.u32 [#allocation2], 4
      %s20 = int_to_ptr.vmem [resolvable:$true] %s19
      %25 = dma.hbm_to_vmem [thread:$0]  %s18, 128, %s20, [#allocation3], 64, 64, 4
    $region5: #{tpu_custom_call.1} parent=1 // pred_fallthru
      _
    // Predicated region
    $region6: #{tpu_custom_call.1} parent=1 // pred_check
      _
    $region7: #{tpu_custom_call.1} parent=1 // pred_check_branch
      %27 = sbr.rel (0) target = $region9
    $region8: #{tpu_custom_call.1} parent=1 // pred_region
      %29 = vsyncadd [#allocation6], 0
      %s30 = sshll.u32 %s1, 4
      %s31 = int_to_ptr.hbm [resolvable:$true] %s30
      %s32 = sshll.u32 [#allocation5], 4
      %s33 = int_to_ptr.vmem [resolvable:$true] %s32
      %38 = dma.hbm_to_vmem [thread:$0]  %s31, 256, %s33, [#allocation6], 64, 64, 4
    $region9: #{tpu_custom_call.1} parent=1 // pred_fallthru
      _
    // Predicated region
    $region10: #{tpu_custom_call.1} parent=1 // pred_check
      _
    $region11: #{tpu_custom_call.1} parent=1 // pred_check_branch
      %40 = sbr.rel (0) target = $region13
    $region12: #{tpu_custom_call.1} parent=1 // pred_region
      _
    $region13: #{tpu_custom_call.1} parent=1 // pred_fallthru
      _
    // Predicated region
    $region14: #{tpu_custom_call.1} parent=1 // pred_check
      _
    $region15: #{tpu_custom_call.1} parent=1 // pred_check_branch
      %42 = sbr.rel (0) target = $region17
    $region16: #{tpu_custom_call.1} parent=1 // pred_region
      _
    $region17: #{tpu_custom_call.1} parent=1 // pred_fallthru
      _
    // Predicated region
    $region18: #{tpu_custom_call.1} parent=1 // pred_check
      _
    $region19: #{tpu_custom_call.1} parent=1 // pred_check_branch
      %44 = sbr.rel (0) target = $region21
    $region20: #{tpu_custom_call.1} parent=1 // pred_region
      _
    $region21: #{tpu_custom_call.1} parent=1 // pred_fallthru
      _
    // Predicated region
    $region22: #{tpu_custom_call.1} parent=1 // pred_check
      _
    $region23: #{tpu_custom_call.1} parent=1 // pred_check_branch
      %46 = sbr.rel (0) target = $region25
    $region24: #{tpu_custom_call.1} parent=1 // pred_region
      %48 = dma.done [#allocation3], 128
    $region25: #{tpu_custom_call.1} parent=1 // pred_fallthru
      _
    // Predicated region
    $region26: #{tpu_custom_call.1} parent=1 // pred_check
      _
    $region27: #{tpu_custom_call.1} parent=1 // pred_check_branch
      %50 = sbr.rel (0) target = $region29
    $region28: #{tpu_custom_call.1} parent=1 // pred_region
      %52 = dma.done [#allocation6], 256
    $region29: #{tpu_custom_call.1} parent=1 // pred_fallthru
      _
    %v54 = vld [vmem:[#allocation2] sm:$0xf]
    %v55 = vld [vmem:[#allocation2 + $0x4] sm:$0xf]
    %v56 = vld [vmem:[#allocation5] sm:$0xf]
    %v57 = vld [vmem:[#allocation5 + $0x4] sm:$0xf]
    %v58 = vld [vmem:[#allocation5 + $0x8] sm:$0xf]
    %v59 = vld [vmem:[#allocation5 + $0xc] sm:$0xf]
    %v60 = vld [vmem:[%s2] sm:$0x1]
    %v62 = vperm.slane %v60, 0
    %v66 = vunpack.c.l.b16 %v54
    %v67 = vunpack.c.l.b16 %v55
    %v68 = vpack.c.b16 %v67, %v66
    %v73 = vunpack.c.l.b16 %v56
    %v74 = vunpack.c.l.b16 %v57
    %v75 = vunpack.c.l.b16 %v58
    %v76 = vunpack.c.l.b16 %v59
    %v77 = vpack.c.b16 %v74, %v73
    %v78 = vpack.c.b16 %v76, %v75
    %vm81 = vcmask 261120
    %v83 = vsel %vm81, %v68, 0
    %85 = vmatpush.bf16.msra.mxu0 0
    %86 = vmatpush.bf16.msra.mxu0 0
    %87 = vmatpush.bf16.msra.mxu0 0
    %88 = vmatpush.bf16.msra.mxu0 0
    %89 = vmatpush.bf16.msra.mxu0 0
    %90 = vmatpush.bf16.msra.mxu0 0
    %91 = vmatpush.bf16.msra.mxu0 %v78
    %92 = vmatpush.bf16.msra.mxu0 %v77
    %93 = vmatmul.bf16.gmra.mxu0 %v83
    %v94 = vpop.f32.mrf.mxu0
    %v95 = vadd.f32 %v62, %v94
    %v96 = vpop.f32.mrf.mxu0
    %v97 = vadd.f32 %v62, %v96
    %98 = vdwg.mxu0
    %v99 = vmul.f32 %v95, 0.5
    %v100 = vmul.f32 %v97, 0.5
    %v101 = vrcp.pop 1.4142135
    %v102 = vmul.f32 1.4142135, %v101
    %v103 = vsub.f32 1.0, %v102
    %v104 = vmul.f32 %v101, %v103
    %v105 = vadd.f32 %v101, %v104
    %vm106 = vweird.f32 %v101
    %v107 = vsel %vm106, %v101, %v105
    %v108 = vmul.f32 %v95, %v107
    %v109 = vmul.f32 %v97, %v107
    %v110 = vmul.f32 %v108, %v108
    %v111 = vmin.f32 16.0, %v110
    %v112 = vmul.f32 %v111, 2.1237322e-06
    %v113 = vadd.f32 %v112, 0.00028619796
    %v114 = vmul.f32 %v111, %v113
    %v115 = vadd.f32 %v114, 0.0036580483
    %v116 = vmul.f32 %v111, %v115
    %v117 = vadd.f32 %v116, 0.05243302
    %v118 = vmul.f32 %v111, %v117
    %v119 = vadd.f32 %v118, 0.18741608
    %v120 = vmul.f32 %v111, %v119
    %v121 = vadd.f32 %v120, 1.1283791
    %v122 = vmul.f32 %v108, %v121
    %v123 = vmul.f32 %v111, 3.8918573e-05
    %v124 = vadd.f32 %v123, 0.001143296
    %v125 = vmul.f32 %v111, %v124
    %v126 = vadd.f32 %v125, 0.014752088
    %v127 = vmul.f32 %v111, %v126
    %v128 = vadd.f32 %v127, 0.112945676
    %v129 = vmul.f32 %v111, %v128
    %v130 = vadd.f32 %v129, 0.4994258
    %v131 = vmul.f32 %v111, %v130
    %v132 = vadd.f32 %v131, 1.0
    %v133 = vrcp.pop %v132
    %v134 = vmul.f32 %v132, %v133
    %v135 = vsub.f32 1.0, %v134
    %v136 = vmul.f32 %v133, %v135
    %v137 = vadd.f32 %v133, %v136
    %vm138 = vweird.f32 %v132
    %vm139 = vweird.f32 %v133
    %vm140 = vmor %vm138, %vm139
    %v141 = vsel %vm140, %v133, %v137
    %v142 = vand.u32 2147483647, %v132
    %vm143 = vcmp.eq.f32.partialorder %v142, 8.507059e+37
    %v144 = vand.u32 %v132, 2147483648
    %v145 = vor.u32 1.1754944e-38, %v144
    %v146 = vsel %vm143, %v145, %v141
    %v147 = vmul.f32 %v122, %v146
    %v148 = vmin.f32 %v147, 1.0
    %v149 = vmax.f32 %v148, -1.0
    %v150 = vmul.f32 %v109, %v109
    %v151 = vmin.f32 16.0, %v150
    %v152 = vmul.f32 %v151, 2.1237322e-06
    %v153 = vadd.f32 %v152, 0.00028619796
    %v154 = vmul.f32 %v151, %v153
    %v155 = vadd.f32 %v154, 0.0036580483
    %v156 = vmul.f32 %v151, %v155
    %v157 = vadd.f32 %v156, 0.05243302
    %v158 = vmul.f32 %v151, %v157
    %v159 = vadd.f32 %v158, 0.18741608
    %v160 = vmul.f32 %v151, %v159
    %v161 = vadd.f32 %v160, 1.1283791
    %v162 = vmul.f32 %v109, %v161
    %v163 = vmul.f32 %v151, 3.8918573e-05
    %v164 = vadd.f32 %v163, 0.001143296
    %v165 = vmul.f32 %v151, %v164
    %v166 = vadd.f32 %v165, 0.014752088
    %v167 = vmul.f32 %v151, %v166
    %v168 = vadd.f32 %v167, 0.112945676
    %v169 = vmul.f32 %v151, %v168
    %v170 = vadd.f32 %v169, 0.4994258
    %v171 = vmul.f32 %v151, %v170
    %v172 = vadd.f32 %v171, 1.0
    %v173 = vrcp.pop %v172
    %v174 = vmul.f32 %v172, %v173
    %v175 = vsub.f32 1.0, %v174
    %v176 = vmul.f32 %v173, %v175
    %v177 = vadd.f32 %v173, %v176
    %vm178 = vweird.f32 %v172
    %vm179 = vweird.f32 %v173
    %vm180 = vmor %vm178, %vm179
    %v181 = vsel %vm180, %v173, %v177
    %v182 = vand.u32 2147483647, %v172
    %vm183 = vcmp.eq.f32.partialorder %v182, 8.507059e+37
    %v184 = vand.u32 %v172, 2147483648
    %v185 = vor.u32 1.1754944e-38, %v184
    %v186 = vsel %vm183, %v185, %v181
    %v187 = vmul.f32 %v162, %v186
    %v188 = vmin.f32 %v187, 1.0
    %v189 = vmax.f32 %v188, -1.0
    %v190 = vadd.f32 %v149, 1.0
    %v191 = vadd.f32 %v189, 1.0
    %v192 = vmul.f32 %v99, %v190
    %v193 = vmul.f32 %v100, %v191
    %v194 = vsel %vm81, %v192, 0.0
    %195 = vadd.xlane.f32.xlu0 %v194
    %v196 = vpop.xlane.xlu0 %195
    %v197 = vsel %vm81, %v193, 0.0
    %198 = vadd.xlane.f32.xlu0 %v197
    %v199 = vpop.xlane.xlu0 %198
    %v200 = vrcp.pop 32.0
    %v201 = vmul.f32 32.0, %v200
    %v202 = vsub.f32 1.0, %v201
    %v203 = vmul.f32 %v200, %v202
    %v204 = vadd.f32 %v200, %v203
    %vm205 = vweird.f32 %v200
    %v206 = vsel %vm205, %v200, %v204
    %v207 = vmul.f32 %v196, %v206
    %v208 = vmul.f32 %v199, %v206
    %v209 = vsub.f32 %v192, %v207
    %v210 = vsub.f32 %v193, %v208
    %v211 = vmul.f32 %v209, %v209
    %v212 = vmul.f32 %v210, %v210
    %v213 = vsel %vm81, %v211, 0.0
    %214 = vadd.xlane.f32.xlu0 %v213
    %v215 = vpop.xlane.xlu0 %214
    %v216 = vsel %vm81, %v212, 0.0
    %217 = vadd.xlane.f32.xlu0 %v216
    %v218 = vpop.xlane.xlu0 %217
    %v219 = vmul.f32 %v215, %v206
    %v220 = vmul.f32 %v218, %v206
    %v221 = vadd.f32 %v219, 1e-12
    %v222 = vadd.f32 %v220, 1e-12
    %v223 = vrsqrt.pop %v221
    %v224 = vmul.f32 %v223, %v221
    %v225 = vmul.f32 %v224, %v223
    %v226 = vmul.f32 0.5, %v225
    %v227 = vsub.f32 1.5, %v226
    %v228 = vmul.f32 %v223, %v227
    %vm229 = vweird.f32 %v221
    %vm230 = vweird.f32 %v223
    %vm231 = vmor %vm229, %vm230
    %v232 = vsel %vm231, %v223, %v228
    %v233 = vrsqrt.pop %v222
    %v234 = vmul.f32 %v233, %v222
    %v235 = vmul.f32 %v234, %v233
    %v236 = vmul.f32 0.5, %v235
    %v237 = vsub.f32 1.5, %v236
    %v238 = vmul.f32 %v233, %v237
    %vm239 = vweird.f32 %v222
    %vm240 = vweird.f32 %v233
    %vm241 = vmor %vm239, %vm240
    %v242 = vsel %vm241, %v233, %v238
    %v243 = vmul.f32 %v209, %v232
    %v244 = vmul.f32 %v210, %v242
    %v245 = vld [vmem:[%s3] sm:$0x1]
    %v247 = vperm.slane %v245, 0
    %v249 = vmul.f32 %v243, %v247
    %v250 = vmul.f32 %v244, %v247
    %v251 = vld [vmem:[%s4] sm:$0x1]
    %v253 = vperm.slane %v251, 0
    %v255 = vadd.f32 %v249, %v253
    %v256 = vadd.f32 %v250, %v253
    %v257 = vpack.c.bf16 %v255, %v255
    %v258 = vpack.c.bf16 %v256, %v256
    %vm259 = vcmask 257024
    %260 = vst.msk [vmem:[#allocation7] sm:$0xf] %vm259, %v257
    %261 = vst.msk [vmem:[#allocation7 + $0x4] sm:$0xf] %vm259, %v258
    // Predicated region
    $region30: #{tpu_custom_call.1} parent=1 // pred_check
      _
    $region31: #{tpu_custom_call.1} parent=1 // pred_check_branch
      %263 = sbr.rel (0) target = $region33
    $region32: #{tpu_custom_call.1} parent=1 // pred_region
      %265 = vsyncadd [#allocation4], 0
      %s266 = sshll.u32 [#allocation7], 4
      %s267 = int_to_ptr.vmem [resolvable:$true] %s266
      %s268 = sshll.u32 %s5, 4
      %s269 = int_to_ptr.hbm [resolvable:$true] %s268
      %274 = dma.vmem_to_hbm [thread:$0]  %s267, 128, %s269, [#allocation4], 64, 64, 4
    $region33: #{tpu_custom_call.1} parent=1 // pred_fallthru
      _
    // Predicated region
    $region34: #{tpu_custom_call.1} parent=1 // pred_check
      _
    $region35: #{tpu_custom_call.1} parent=1 // pred_check_branch
      %276 = sbr.rel (0) target = $region37
    $region36: #{tpu_custom_call.1} parent=1 // pred_region
      %278 = dma.done [#allocation4], 128
    $region37: #{tpu_custom_call.1} parent=1 // pred_fallthru
      _
    %279 = vsyncpa [#allocation3], 1
    %280 = vsyncpa [#allocation6], 1
    %281 = vsyncpa [#allocation4], 1

</llo_original>
